<compile_context>
chip_gen: v6e
topology: v6e:2x2x1
jax: 0.10.0
libtpu: 0.0.40
codegen_flags: <defaults>
</compile_context>

<pallas_src>
import jax
import jax.numpy as jnp
from jax.experimental import pallas as pl
from jax.experimental.pallas import tpu as pltpu


def _round_up(a, b):
    return (a + b - 1) // b * b


def _tile_geom(n, block, align, min_split=0):
    """Even-split tiling: tile size (multiple of `align`) and padded extent."""
    padded = _round_up(n, align)
    num_tiles = -(-padded // block)
    if min_split and num_tiles == 1 and padded >= min_split:
        num_tiles = 2  # megacore balance on v7x: give each TensorCore a row tile
    tile = _round_up(-(-padded // num_tiles), align)
    return tile, num_tiles * tile


def _make_kernel(margin, tn):
    lane_groups = tn // 128  # tn is always a multiple of 128

    def kernel(x_ref, xt2_ref, sqr_ref, sqc_ref, lrow_ref, lcol_ref,
               hinge_ref, ap2_acc, an2_acc):
        k = pl.program_id(1)

        @pl.when(k == 0)
        def _():
            ap2_acc[...] = jnp.full(ap2_acc.shape, -jnp.inf, jnp.float32)
            an2_acc[...] = jnp.full(an2_acc.shape, jnp.inf, jnp.float32)

        # Gram tile on the MXU in the input dtype, f32 accumulate. xt2 already carries
        # the factor 2, so dist2 = ||xi||^2 + ||xj||^2 - 2 <xi, xj> with no extra mul.
        gram = jnp.dot(x_ref[...], xt2_ref[...],
                       preferred_element_type=jnp.float32)              # (tm, tn)
        dist2 = sqr_ref[...] + sqc_ref[...] - gram                       # (tm, tn)

        # Padded columns were poisoned in the wrapper:
        #  * label sentinel (never equal to a real row label)  -> never a positive
        #  * sq_col = +inf (dist2 = +inf)                       -> never the min negative
        same = lrow_ref[...] == lcol_ref[...]                            # (tm, tn)
        pos = jnp.where(same, dist2, -jnp.inf)
        neg = jnp.where(same, jnp.inf, dist2)

        # Fold the TN columns into a lane-dense (tm, 128) accumulator with pure
        # elementwise max/min over static 128-lane groups (no cross-lane XLU work).
        ap = pos[:, 0:128]
        an = neg[:, 0:128]
        for g in range(1, lane_groups):
            lo = g * 128
            ap = jnp.maximum(ap, pos[:, lo:lo + 128])
            an = jnp.minimum(an, neg[:, lo:lo + 128])
        ap2_acc[...] = jnp.maximum(ap2_acc[...], ap)
        an2_acc[...] = jnp.minimum(an2_acc[...], an)

        @pl.when(k == pl.num_programs(1) - 1)
        def _():
            # One cross-lane 128->1 reduction per row tile, then clamp+sqrt on the
            # reduced vectors (sqrt is monotone, so it commutes with max/min).
            ap2 = jnp.max(ap2_acc[...], axis=1, keepdims=True)           # (tm, 1)
            an2 = jnp.min(an2_acc[...], axis=1, keepdims=True)           # (tm, 1)
            dist_ap = jnp.sqrt(jnp.maximum(ap2, 1e-12))
            dist_an = jnp.sqrt(jnp.maximum(an2, 1e-12))
            hinge_ref[...] = jnp.maximum(dist_ap - dist_an + margin, 0.0)

    return kernel


def triplet_loss(inputs, targets, margin=0.3, block_m=512, block_n=512):
    """Batch-hard triplet loss. inputs: (N, D), targets: (N,) int. Returns scalar f32."""
    n, d = inputs.shape
    targets = targets.astype(jnp.int32)

    # ---- tile / padding geometry (rows and columns padded independently) ---------
    block_m = max(8, _round_up(block_m, 8))
    block_n = max(128, _round_up(block_n, 128))
    tm, n_row_pad = _tile_geom(n, block_m, 8, min_split=256)
    tn, n_col_pad = _tile_geom(n, block_n, 128)
    grid = (n_row_pad // tm, n_col_pad // tn)

    # ---- padded operands prepared host-side (all O(N*D) / O(N) work) -------------
    x_pad = jnp.zeros((n_row_pad, d), inputs.dtype).at[:n].set(inputs)
    xc_pad = jnp.zeros((n_col_pad, d), inputs.dtype).at[:n].set(inputs)
    xt2_pad = (2.0 * xc_pad).T                      # (D, N_col_pad), factor 2 folded in

    sq_real = jnp.sum(inputs.astype(jnp.float32) ** 2, axis=1)          # (N,)
    sq_row = jnp.zeros((n_row_pad, 1), jnp.float32).at[:n, 0].set(sq_real)
    # +inf poison: padded columns can never be the hardest negative.
    sq_col = jnp.full((1, n_col_pad), jnp.inf, jnp.float32).at[0, :n].set(sq_real)

    # Label sentinel strictly below any real label: padded columns can never be positives.
    pad_label = jnp.min(targets) - 1
    l_row = jnp.zeros((n_row_pad, 1), jnp.int32).at[:n, 0].set(targets)  # padded rows sliced off
    l_col = jnp.full((1, n_col_pad), pad_label, jnp.int32).at[0, :n].set(targets)

    grid_spec = pltpu.PrefetchScalarGridSpec(
        num_scalar_prefetch=0,
        grid=grid,
        in_specs=[
            pl.BlockSpec((tm, d), lambda i, k: (i, 0)),   # x row tile
            pl.BlockSpec((d, tn), lambda i, k: (0, k)),   # (2x)^T col tile
            pl.BlockSpec((tm, 1), lambda i, k: (i, 0)),   # ||x_i||^2 (rows)
            pl.BlockSpec((1, tn), lambda i, k: (0, k)),   # ||x_j||^2 (cols, +inf poisoned pad)
            pl.BlockSpec((tm, 1), lambda i, k: (i, 0)),   # row labels
            pl.BlockSpec((1, tn), lambda i, k: (0, k)),   # col labels (sentinel in pad)
        ],
        out_specs=pl.BlockSpec((tm, 1), lambda i, k: (i, 0)),
        scratch_shapes=[
            pltpu.VMEM((tm, 128), jnp.float32),   # lane-dense running max of dist^2 (positives)
            pltpu.VMEM((tm, 128), jnp.float32),   # lane-dense running min of dist^2 (negatives)
        ],
    )

    hinge = pl.pallas_call(
        _make_kernel(float(margin), tn),
        out_shape=jax.ShapeDtypeStruct((n_row_pad, 1), jnp.float32),
        grid_spec=grid_spec,
        compiler_params=pltpu.CompilerParams(
            dimension_semantics=("parallel", "arbitrary"),
            vmem_limit_bytes=64 * 1024 * 1024,
        ),
    )(x_pad, xt2_pad, sq_row, sq_col, l_row, l_col)

    # Final mean over the real rows (tiny O(N) op, fused by XLA).
    return jnp.mean(hinge[:n, 0])


def _triplet_loss_ref(inputs, targets, margin=0.3):
    """Pure-JAX reference mirroring the PyTorch forward, for verification."""
    x = inputs.astype(jnp.float32)
    sq = jnp.sum(x * x, axis=1, keepdims=True)
    dist = sq + sq.T - 2.0 * (x @ x.T)
    dist = jnp.sqrt(jnp.maximum(dist, 1e-12))
    mask = targets[:, None] == targets[None, :]
    dist_ap = jnp.max(jnp.where(mask, dist, -jnp.inf), axis=1)
    dist_an = jnp.min(jnp.where(mask, jnp.inf, dist), axis=1)
    return jnp.mean(jnp.maximum(dist_ap - dist_an + margin, 0.0))


if __name__ == "__main__":
    key = jax.random.PRNGKey(0)
    k1, k2 = jax.random.split(key)

    # Small module-consistent shapes: PK-sampled batch of 8 embeddings, feat_dim=32.
    batch, feat = 8, 32
    x = jax.random.normal(k1, (batch, feat), dtype=jnp.float32)
    targets = jnp.array([0, 0, 1, 1, 2, 2, 3, 3], dtype=jnp.int32)  # 4 ids x 2 samples

    loss = jax.block_until_ready(triplet_loss(x, targets, margin=0.3))
    ref = _triplet_loss_ref(x, targets, margin=0.3)
    assert jnp.allclose(loss, ref, rtol=1e-5, atol=1e-5), (loss, ref)

    # Second case: multi-row-tile + multi-column-tile grid with padding (N not aligned),
    # exercising the running accumulator across the column (reduction) axis.
    n2, d2 = 300, 64
    x2 = jax.random.normal(k2, (n2, d2), dtype=jnp.float32)
    t2 = jnp.mod(jnp.arange(n2, dtype=jnp.int32), 5)  # 5 identities
    loss2 = jax.block_until_ready(
        triplet_loss(x2, t2, margin=0.3, block_m=128, block_n=128))
    ref2 = _triplet_loss_ref(x2, t2, margin=0.3)
    assert jnp.allclose(loss2, ref2, rtol=1e-4, atol=1e-5), (loss2, ref2)

    print("KERNEL_OK")
</pallas_src>

<mosaic_0001>
module attributes {stable_mosaic.version = 11 : i64} {
  func.func @kernel(%arg0: i32, %arg1: i32, %arg2: memref<8x32xf32, #tpu.memory_space<vmem>>, %arg3: memref<32x128xf32, #tpu.memory_space<vmem>>, %arg4: memref<8x1xf32, #tpu.memory_space<vmem>>, %arg5: memref<1x128xf32, #tpu.memory_space<vmem>>, %arg6: memref<8x1xi32, #tpu.memory_space<vmem>>, %arg7: memref<1x128xi32, #tpu.memory_space<vmem>>, %arg8: memref<8x1xf32, #tpu.memory_space<vmem>>, %arg9: memref<8x128xf32, #tpu.memory_space<vmem>>, %arg10: memref<8x128xf32, #tpu.memory_space<vmem>>) attributes {dimension_semantics = [#tpu.dimension_semantics<parallel>, #tpu.dimension_semantics<arbitrary>], iteration_bounds = array<i64: 1, 1>, scalar_prefetch = 0 : i64, scratch_operands = 2 : i64, tpu.core_type = #tpu.core_type<tc>, window_params = [{transform_indices = @transform_0, window_bounds = array<i64: 8, 32>}, {transform_indices = @transform_1, window_bounds = array<i64: 32, 128>}, {transform_indices = @transform_2, window_bounds = array<i64: 8, 1>}, {transform_indices = @transform_3, window_bounds = array<i64: 1, 128>}, {transform_indices = @transform_4, window_bounds = array<i64: 8, 1>}, {transform_indices = @transform_5, window_bounds = array<i64: 1, 128>}, {transform_indices = @transform_6, window_bounds = array<i64: 8, 1>}]} {
    %c0_i32 = arith.constant 0 : i32
    %0 = arith.cmpi eq, %arg1, %c0_i32 : i32
    %1 = arith.extui %0 : i1 to i32
    %c0_i32_0 = arith.constant 0 : i32
    %2 = arith.cmpi ne, %1, %c0_i32_0 : i32
    scf.if %2 {
      %cst_24 = arith.constant 0xFF800000 : f32
      %30 = vector.broadcast %cst_24 : f32 to vector<8x128xf32>
      %c0_25 = arith.constant 0 : index
      %c0_26 = arith.constant 0 : index
      %31 = vector.load %arg9[%c0_25, %c0_26] : memref<8x128xf32, #tpu.memory_space<vmem>>, vector<8x128xf32>
      tpu.vector_store %arg9[%c0_25, %c0_26], %30 {strides = array<i32>} : memref<8x128xf32, #tpu.memory_space<vmem>>, vector<8x128xf32>,
      %cst_27 = arith.constant 0x7F800000 : f32
      %32 = vector.broadcast %cst_27 : f32 to vector<8x128xf32>
      %c0_28 = arith.constant 0 : index
      %c0_29 = arith.constant 0 : index
      %33 = vector.load %arg10[%c0_28, %c0_29] : memref<8x128xf32, #tpu.memory_space<vmem>>, vector<8x128xf32>
      tpu.vector_store %arg10[%c0_28, %c0_29], %32 {strides = array<i32>} : memref<8x128xf32, #tpu.memory_space<vmem>>, vector<8x128xf32>,
    } else {
    }
    %c0 = arith.constant 0 : index
    %c0_1 = arith.constant 0 : index
    %3 = vector.load %arg2[%c0, %c0_1] : memref<8x32xf32, #tpu.memory_space<vmem>>, vector<8x32xf32>
    %c0_2 = arith.constant 0 : index
    %c0_3 = arith.constant 0 : index
    %4 = vector.load %arg3[%c0_2, %c0_3] : memref<32x128xf32, #tpu.memory_space<vmem>>, vector<32x128xf32>
    %cst = arith.constant dense<0.000000e+00> : vector<8x128xf32>
    %5 = tpu.matmul %3, %4, %cst {dimension_numbers = #tpu.dot_dimension_numbers<[1], [0], [0], [1], [0, 0, 1, 1], [], []>} : vector<8x32xf32>, vector<32x128xf32>, vector<8x128xf32> -> vector<8x128xf32>
    %c0_4 = arith.constant 0 : index
    %c0_5 = arith.constant 0 : index
    %6 = vector.load %arg4[%c0_4, %c0_5] : memref<8x1xf32, #tpu.memory_space<vmem>>, vector<8x1xf32>
    %c0_6 = arith.constant 0 : index
    %c0_7 = arith.constant 0 : index
    %7 = vector.load %arg5[%c0_6, %c0_7] : memref<1x128xf32, #tpu.memory_space<vmem>>, vector<1x128xf32>
    %8 = vector.broadcast %6 : vector<8x1xf32> to vector<8x128xf32>
    %9 = vector.broadcast %7 : vector<1x128xf32> to vector<8x128xf32>
    %10 = arith.addf %8, %9 : vector<8x128xf32>
    %11 = arith.subf %10, %5 : vector<8x128xf32>
    %c0_8 = arith.constant 0 : index
    %c0_9 = arith.constant 0 : index
    %12 = vector.load %arg6[%c0_8, %c0_9] : memref<8x1xi32, #tpu.memory_space<vmem>>, vector<8x1xi32>
    %c0_10 = arith.constant 0 : index
    %c0_11 = arith.constant 0 : index
    %13 = vector.load %arg7[%c0_10, %c0_11] : memref<1x128xi32, #tpu.memory_space<vmem>>, vector<1x128xi32>
    %14 = vector.broadcast %12 : vector<8x1xi32> to vector<8x128xi32>
    %15 = vector.broadcast %13 : vector<1x128xi32> to vector<8x128xi32>
    %16 = arith.cmpi eq, %14, %15 : vector<8x128xi32>
    %cst_12 = arith.constant 0xFF800000 : f32
    %17 = vector.broadcast %cst_12 : f32 to vector<8x128xf32>
    %18 = arith.select %16, %11, %17 : vector<8x128xi1>, vector<8x128xf32>
    %cst_13 = arith.constant 0x7F800000 : f32
    %19 = vector.broadcast %cst_13 : f32 to vector<8x128xf32>
    %20 = arith.select %16, %19, %11 : vector<8x128xi1>, vector<8x128xf32>
    %c0_14 = arith.constant 0 : index
    %c0_15 = arith.constant 0 : index
    %21 = vector.load %arg9[%c0_14, %c0_15] : memref<8x128xf32, #tpu.memory_space<vmem>>, vector<8x128xf32>
    %22 = arith.maximumf %21, %18 : vector<8x128xf32>
    %c0_16 = arith.constant 0 : index
    %c0_17 = arith.constant 0 : index
    %23 = vector.load %arg9[%c0_16, %c0_17] : memref<8x128xf32, #tpu.memory_space<vmem>>, vector<8x128xf32>
    tpu.vector_store %arg9[%c0_16, %c0_17], %22 {strides = array<i32>} : memref<8x128xf32, #tpu.memory_space<vmem>>, vector<8x128xf32>,
    %c0_18 = arith.constant 0 : index
    %c0_19 = arith.constant 0 : index
    %24 = vector.load %arg10[%c0_18, %c0_19] : memref<8x128xf32, #tpu.memory_space<vmem>>, vector<8x128xf32>
    %25 = arith.minimumf %24, %20 : vector<8x128xf32>
    %c0_20 = arith.constant 0 : index
    %c0_21 = arith.constant 0 : index
    %26 = vector.load %arg10[%c0_20, %c0_21] : memref<8x128xf32, #tpu.memory_space<vmem>>, vector<8x128xf32>
    tpu.vector_store %arg10[%c0_20, %c0_21], %25 {strides = array<i32>} : memref<8x128xf32, #tpu.memory_space<vmem>>, vector<8x128xf32>,
    %c0_i32_22 = arith.constant 0 : i32
    %27 = arith.cmpi eq, %arg1, %c0_i32_22 : i32
    %28 = arith.extui %27 : i1 to i32
    %c0_i32_23 = arith.constant 0 : i32
    %29 = arith.cmpi ne, %28, %c0_i32_23 : i32
    scf.if %29 {
      %c0_24 = arith.constant 0 : index
      %c0_25 = arith.constant 0 : index
      %30 = vector.load %arg9[%c0_24, %c0_25] : memref<8x128xf32, #tpu.memory_space<vmem>>, vector<8x128xf32>
      %cst_26 = arith.constant dense<0xFF800000> : vector<8xf32>
      %31 = vector.multi_reduction <maximumf>, %30, %cst_26 [1] : vector<8x128xf32> to vector<8xf32>
      %32 = vector.shape_cast %31 : vector<8xf32> to vector<8x1xf32>
      %c0_27 = arith.constant 0 : index
      %c0_28 = arith.constant 0 : index
      %33 = vector.load %arg10[%c0_27, %c0_28] : memref<8x128xf32, #tpu.memory_space<vmem>>, vector<8x128xf32>
      %cst_29 = arith.constant dense<0x7F800000> : vector<8xf32>
      %34 = vector.multi_reduction <minimumf>, %33, %cst_29 [1] : vector<8x128xf32> to vector<8xf32>
      %35 = vector.shape_cast %34 : vector<8xf32> to vector<8x1xf32>
      %cst_30 = arith.constant 9.99999996E-13 : f32
      %36 = vector.broadcast %cst_30 : f32 to vector<8x1xf32>
      %37 = arith.maximumf %32, %36 : vector<8x1xf32>
      %38 = math.sqrt %37 : vector<8x1xf32>
      %cst_31 = arith.constant 9.99999996E-13 : f32
      %39 = vector.broadcast %cst_31 : f32 to vector<8x1xf32>
      %40 = arith.maximumf %35, %39 : vector<8x1xf32>
      %41 = math.sqrt %40 : vector<8x1xf32>
      %42 = arith.subf %38, %41 : vector<8x1xf32>
      %cst_32 = arith.constant 3.000000e-01 : f32
      %43 = vector.broadcast %cst_32 : f32 to vector<8x1xf32>
      %44 = arith.addf %42, %43 : vector<8x1xf32>
      %cst_33 = arith.constant 0.000000e+00 : f32
      %45 = vector.broadcast %cst_33 : f32 to vector<8x1xf32>
      %46 = arith.maximumf %44, %45 : vector<8x1xf32>
      %c0_34 = arith.constant 0 : index
      %c0_35 = arith.constant 0 : index
      %47 = vector.load %arg8[%c0_34, %c0_35] : memref<8x1xf32, #tpu.memory_space<vmem>>, vector<8x1xf32>
      tpu.vector_store %arg8[%c0_34, %c0_35], %46 {strides = array<i32>} : memref<8x1xf32, #tpu.memory_space<vmem>>, vector<8x1xf32>,
    } else {
    }
    return
  }
  func.func @transform_0(%arg0: i32, %arg1: i32) -> (i32, i32) {
    %c0_i32 = arith.constant 0 : i32
    %c0_i32_0 = arith.constant 0 : i32
    return %arg0, %c0_i32 : i32, i32
  }
  func.func @transform_1(%arg0: i32, %arg1: i32) -> (i32, i32) {
    %c0_i32 = arith.constant 0 : i32
    %c0_i32_0 = arith.constant 0 : i32
    return %c0_i32, %arg1 : i32, i32
  }
  func.func @transform_2(%arg0: i32, %arg1: i32) -> (i32, i32) {
    %c0_i32 = arith.constant 0 : i32
    %c0_i32_0 = arith.constant 0 : i32
    return %arg0, %c0_i32 : i32, i32
  }
  func.func @transform_3(%arg0: i32, %arg1: i32) -> (i32, i32) {
    %c0_i32 = arith.constant 0 : i32
    %c0_i32_0 = arith.constant 0 : i32
    return %c0_i32, %arg1 : i32, i32
  }
  func.func @transform_4(%arg0: i32, %arg1: i32) -> (i32, i32) {
    %c0_i32 = arith.constant 0 : i32
    %c0_i32_0 = arith.constant 0 : i32
    return %arg0, %c0_i32 : i32, i32
  }
  func.func @transform_5(%arg0: i32, %arg1: i32) -> (i32, i32) {
    %c0_i32 = arith.constant 0 : i32
    %c0_i32_0 = arith.constant 0 : i32
    return %c0_i32, %arg1 : i32, i32
  }
  func.func @transform_6(%arg0: i32, %arg1: i32) -> (i32, i32) {
    %c0_i32 = arith.constant 0 : i32
    %c0_i32_0 = arith.constant 0 : i32
    return %arg0, %c0_i32 : i32, i32
  }
}

</mosaic_0001>

<llo_original>
// kernel: tpu_custom_call.1
$region0: #{tpu_custom_call.1}
  #allocation0 [shape = 'u32[]', space=smem, size = 0x4, offset = 0x4, fixed_abs, tag = 'smem constant byte address 0x4 - core index']
  #allocation1 [shape = 'u32[144,128]{1,0:T(1,128)}', space=vmem, size = 0x12000, scoped, tag = 'internal scratch']
  #allocation2 [shape = 'f32[8,128]{1,0:T(8,128)}', space=vmem, size = 0x1000, scoped, tag = 'scratch operand']
  #allocation3 [shape = 'f32[8,128]{1,0:T(8,128)}', space=vmem, size = 0x1000, scoped, tag = 'scratch operand']
  %s0 = inlined_call_operand.vmem [shape: f32[8,32], index: 0, kind: input, shape index: {}]
  %s1 = inlined_call_operand.hbm [shape: f32[32,128], index: 1, kind: input, shape index: {}]
  %s2 = inlined_call_operand.vmem [shape: f32[8,1], index: 2, kind: input, shape index: {}]
  %s3 = inlined_call_operand.vmem [shape: f32[1,128], index: 3, kind: input, shape index: {}]
  %s4 = inlined_call_operand.vmem [shape: s32[8,1], index: 4, kind: input, shape index: {}]
  %s5 = inlined_call_operand.vmem [shape: s32[1,128], index: 5, kind: input, shape index: {}]
  %s6 = inlined_call_operand.vmem [shape: f32[8,1], index: 6, kind: output, shape index: {}]
  %s7 = sld [smem:[#allocation0]]
  $region46: #{tpu_custom_call.1} parent=0
    _
  %s9 = ssub.s32 1, %s7
  %s10 = scalar_select 0, %s9, %s7
  $region1: #{tpu_custom_call.1} parent=0
    #allocation4 [shape = 'u8[16384]{0}', space=vmem, size = 0x4000, scoped, tag = 'input window, operand 1, single buffered']
    #allocation5 [shape = 's32[1]{0}', space=sflag, size = 0x4, scoped, tag = 'scoped memory for tpu_custom_call.1']
    %11 = vsyncpa [#allocation5], 0
    // Predicated region
    $region2: #{tpu_custom_call.1} parent=1 // pred_check
      _
    $region3: #{tpu_custom_call.1} parent=1 // pred_check_branch
      %13 = sbr.rel (0) target = $region5
    $region4: #{tpu_custom_call.1} parent=1 // pred_region
      _
    $region5: #{tpu_custom_call.1} parent=1 // pred_fallthru
      _
    // Predicated region
    $region6: #{tpu_custom_call.1} parent=1 // pred_check
      _
    $region7: #{tpu_custom_call.1} parent=1 // pred_check_branch
      %15 = sbr.rel (0) target = $region9
    $region8: #{tpu_custom_call.1} parent=1 // pred_region
      %s17 = ssub.s32 512, 512
      %18 = vsyncadd [#allocation5], %s17
      %s19 = sshll.u32 [#allocation4], 4
      %s20 = int_to_ptr.vmem [resolvable:$true] %s19
      %25 = dma.hbm_to_vmem [thread:$0]  %s1, 512, %s20, [#allocation5], 128, 128, 8
    $region9: #{tpu_custom_call.1} parent=1 // pred_fallthru
      _
    // Predicated region
    $region10: #{tpu_custom_call.1} parent=1 // pred_check
      _
    $region11: #{tpu_custom_call.1} parent=1 // pred_check_branch
      %27 = sbr.rel (0) target = $region13
    $region12: #{tpu_custom_call.1} parent=1 // pred_region
      _
    $region13: #{tpu_custom_call.1} parent=1 // pred_fallthru
      _
    // Predicated region
    $region14: #{tpu_custom_call.1} parent=1 // pred_check
      _
    $region15: #{tpu_custom_call.1} parent=1 // pred_check_branch
      %29 = sbr.rel (0) target = $region17
    $region16: #{tpu_custom_call.1} parent=1 // pred_region
      _
    $region17: #{tpu_custom_call.1} parent=1 // pred_fallthru
      _
    // Predicated region
    $region18: #{tpu_custom_call.1} parent=1 // pred_check
      _
    $region19: #{tpu_custom_call.1} parent=1 // pred_check_branch
      %31 = sbr.rel (0) target = $region21
    $region20: #{tpu_custom_call.1} parent=1 // pred_region
      _
    $region21: #{tpu_custom_call.1} parent=1 // pred_fallthru
      _
    // Predicated region
    $region22: #{tpu_custom_call.1} parent=1 // pred_check
      _
    $region23: #{tpu_custom_call.1} parent=1 // pred_check_branch
      %33 = sbr.rel (0) target = $region25
    $region24: #{tpu_custom_call.1} parent=1 // pred_region
      _
    $region25: #{tpu_custom_call.1} parent=1 // pred_fallthru
      _
    // Predicated region
    $region26: #{tpu_custom_call.1} parent=1 // pred_check
      _
    $region27: #{tpu_custom_call.1} parent=1 // pred_check_branch
      %35 = sbr.rel (0) target = $region29
    $region28: #{tpu_custom_call.1} parent=1 // pred_region
      %36 = dma.done [#allocation5], 512
    $region29: #{tpu_custom_call.1} parent=1 // pred_fallthru
      _
    %p37 = scmp.eq.s32.totalorder 0, 0
    // Predicated region
    $region30: #{tpu_custom_call.1} parent=1 // pred_check
      %p38 = pneg %p37
    $region31: #{tpu_custom_call.1} parent=1 // pred_check_branch
      %40 = sbr.rel (%p38) target = $region33
    $region32: #{tpu_custom_call.1} parent=1 // pred_region
      %41 = vst [vmem:[#allocation2] sm:$0xff] -inf
      %42 = vst [vmem:[#allocation3] sm:$0xff] inf
    $region33: #{tpu_custom_call.1} parent=1 // pred_fallthru
      _
    %v43 = vld [vmem:[%s0] sm:$0xff]
    %v44 = vld [vmem:[#allocation4] sm:$0xff]
    %v45 = vld [vmem:[#allocation4 + $0x8] sm:$0xff]
    %v46 = vld [vmem:[#allocation4 + $0x10] sm:$0xff]
    %v47 = vld [vmem:[#allocation4 + $0x18] sm:$0xff]
    %vm48 = vcmask 261120
    %v50 = vsel %vm48, %v43, 0
    %52 = vmatprep.subr.mxu0 0.0
    %53 = vmatpush1.msra.mxu0 0.0
    %54 = vmatprep.subr.mxu0 0.0
    %55 = vmatpush1.msra.mxu0 0.0
    %56 = vmatprep.subr.mxu0 0.0
    %57 = vmatpush1.msra.mxu0 0.0
    %58 = vmatprep.subr.mxu0 0.0
    %59 = vmatpush1.msra.mxu0 0.0
    %60 = vmatprep.subr.mxu0 0.0
    %61 = vmatpush1.msra.mxu0 0.0
    %62 = vmatprep.subr.mxu0 0.0
    %63 = vmatpush1.msra.mxu0 0.0
    %64 = vmatprep.subr.mxu0 0.0
    %65 = vmatpush1.msra.mxu0 0.0
    %66 = vmatprep.subr.mxu0 0.0
    %67 = vmatpush1.msra.mxu0 0.0
    %68 = vmatprep.subr.mxu0 0.0
    %69 = vmatpush1.msra.mxu0 0.0
    %70 = vmatprep.subr.mxu0 0.0
    %71 = vmatpush1.msra.mxu0 0.0
    %72 = vmatprep.subr.mxu0 0.0
    %73 = vmatpush1.msra.mxu0 0.0
    %74 = vmatprep.subr.mxu0 0.0
    %75 = vmatpush1.msra.mxu0 0.0
    %76 = vmatprep.subr.mxu0 0.0
    %77 = vmatpush1.msra.mxu0 %v47
    %78 = vmatprep.subr.mxu0 0.0
    %79 = vmatpush1.msra.mxu0 %v46
    %80 = vmatprep.subr.mxu0 0.0
    %81 = vmatpush1.msra.mxu0 %v45
    %82 = vmatprep.subr.mxu0 0.0
    %83 = vmatpush1.msra.mxu0 %v44
    %84 = vmatprep.subr.mxu0 0.0
    %85 = vmatpush2.msra.mxu0 0.0
    %86 = vmatprep.subr.mxu0 0.0
    %87 = vmatpush2.msra.mxu0 0.0
    %88 = vmatprep.subr.mxu0 0.0
    %89 = vmatpush2.msra.mxu0 0.0
    %90 = vmatprep.subr.mxu0 0.0
    %91 = vmatpush2.msra.mxu0 0.0
    %92 = vmatprep.subr.mxu0 0.0
    %93 = vmatpush2.msra.mxu0 0.0
    %94 = vmatprep.subr.mxu0 0.0
    %95 = vmatpush2.msra.mxu0 0.0
    %96 = vmatprep.subr.mxu0 0.0
    %97 = vmatpush2.msra.mxu0 0.0
    %98 = vmatprep.subr.mxu0 0.0
    %99 = vmatpush2.msra.mxu0 0.0
    %100 = vmatprep.subr.mxu0 0.0
    %101 = vmatpush2.msra.mxu0 0.0
    %102 = vmatprep.subr.mxu0 0.0
    %103 = vmatpush2.msra.mxu0 0.0
    %104 = vmatprep.subr.mxu0 0.0
    %105 = vmatpush2.msra.mxu0 0.0
    %106 = vmatprep.subr.mxu0 0.0
    %107 = vmatpush2.msra.mxu0 0.0
    %108 = vmatprep.subr.mxu0 0.0
    %109 = vmatpush2.msra.mxu0 0.0
    %110 = vmatprep.subr.mxu0 0.0
    %111 = vmatpush2.msra.mxu0 0.0
    %112 = vmatprep.subr.mxu0 0.0
    %113 = vmatpush2.msra.mxu0 0.0
    %114 = vmatprep.subr.mxu0 0.0
    %115 = vmatpush2.msra.mxu0 0.0
    %116 = vmatprep.mubr.f32.mxu0 0.0
    %117 = vmatmul.mubr.f32.gmra.mxu0 %v50
    %v118 = vpop.f32.mrf.mxu0
    %v119 = vadd.f32 0.0, %v118
    %v120 = vpop.f32.mrf.mxu0
    %121 = vdwg.mxu0
    %v122 = vld [vmem:[%s2] sm:$0xff]
    %v123 = vld [vmem:[%s3] sm:$0x1]
    %125 = vset.pattern.permute.xlu0 0
    %126 = vperm.xlu0 %125, %v122
    %v127 = vpop.permute.xlu0 %126
    %v130 = vlaneseq
    %v131 = vshrl.u32 %v130, 7
    %v132 = vsub.s32 0, %v131
    %v133 = vrot.slane %v123, %v132
    %v135 = vadd.f32 %v127, %v133
    %v136 = vsub.f32 %v135, %v119
    %v137 = vld [vmem:[%s4] sm:$0xff]
    %v138 = vld [vmem:[%s5] sm:$0x1]
    %139 = vset.pattern.permute.xlu0 0
    %140 = vperm.xlu0 %139, %v137
    %v141 = vpop.permute.xlu0 %140
    %v142 = vlaneseq
    %v143 = vshrl.u32 %v142, 7
    %v144 = vsub.s32 0, %v143
    %v145 = vrot.slane %v138, %v144
    %vm146 = vcmp.eq.s32.totalorder %v141, %v145
    %v147 = vsel %vm146, %v136, -inf
    %v148 = vsel %vm146, inf, %v136
    %v149 = vld [vmem:[#allocation2] sm:$0xff]
    %v150 = vmax.f32 %v149, %v147
    %151 = vst [vmem:[#allocation2] sm:$0xff] %v150
    %v152 = vld [vmem:[#allocation3] sm:$0xff]
    %v153 = vmin.f32 %v152, %v148
    %154 = vst [vmem:[#allocation3] sm:$0xff] %v153
    // Predicated region
    $region34: #{tpu_custom_call.1} parent=1 // pred_check
      %p155 = pneg %p37
    $region35: #{tpu_custom_call.1} parent=1 // pred_check_branch
      %157 = sbr.rel (%p155) target = $region37
    $region36: #{tpu_custom_call.1} parent=1 // pred_region
      %v158 = vld [vmem:[#allocation2] sm:$0xff]
      %159 = vmax.xlane.f32.xlu0 %v158
      %v160 = vpop.xlane.xlu0 %159
      %v161 = vld [vmem:[#allocation3] sm:$0xff]
      %162 = vmin.xlane.f32.xlu0 %v161
      %v163 = vpop.xlane.xlu0 %162
      %v164 = vmax.f32 %v160, 1e-12
      %v165 = vrsqrt.pop %v164
      %v166 = vmul.f32 %v164, %v165
      %vm167 = vcmp.eq.f32.partialorder %v164, inf
      %v168 = vsel %vm167, %v164, %v166
      %vm169 = vcmp.eq.f32.partialorder %v164, 0.0
      %v170 = vand.u32 %v164, 2147483648
      %v171 = vsel %vm169, %v170, %v168
      %v172 = vmax.f32 %v163, 1e-12
      %v173 = vrsqrt.pop %v172
      %v174 = vmul.f32 %v172, %v173
      %vm175 = vcmp.eq.f32.partialorder %v172, inf
      %v176 = vsel %vm175, %v172, %v174
      %vm177 = vcmp.eq.f32.partialorder %v172, 0.0
      %v178 = vand.u32 %v172, 2147483648
      %v179 = vsel %vm177, %v178, %v176
      %v180 = vsub.f32 %v171, %v179
      %v181 = vadd.f32 %v180, 0.3
      %v182 = vmax.f32 %v181, 0.0
      %vm183 = vcmask 7168
      %184 = vst.msk [vmem:[%s6] sm:$0xff] %vm183, %v182
    $region37: #{tpu_custom_call.1} parent=1 // pred_fallthru
      _
    // Predicated region
    $region38: #{tpu_custom_call.1} parent=1 // pred_check
      _
    $region39: #{tpu_custom_call.1} parent=1 // pred_check_branch
      %186 = sbr.rel (0) target = $region41
    $region40: #{tpu_custom_call.1} parent=1 // pred_region
      _
    $region41: #{tpu_custom_call.1} parent=1 // pred_fallthru
      _
    // Predicated region
    $region42: #{tpu_custom_call.1} parent=1 // pred_check
      _
    $region43: #{tpu_custom_call.1} parent=1 // pred_check_branch
      %188 = sbr.rel (0) target = $region45
    $region44: #{tpu_custom_call.1} parent=1 // pred_region
      _
    $region45: #{tpu_custom_call.1} parent=1 // pred_fallthru
      _
    %189 = vsyncpa [#allocation5], 1

</llo_original>
